<compile_context>
chip_gen: v5e
topology: v5e:2x2
jax: 0.10.0
libtpu: 0.0.40
codegen_flags: <defaults>
</compile_context>

<pallas_src>
import functools

import jax
import jax.numpy as jnp
from jax.experimental import pallas as pl
from jax.experimental.pallas import tpu as pltpu


def _round_up(x, m):
    return (x + m - 1) // m * m


def _tpu_info():
    """(device_kind_lowercased, vmem_capacity_bytes) with safe fallbacks."""
    kind = ""
    try:
        kind = jax.devices()[0].device_kind.lower()
    except Exception:
        pass
    vmem_cap = None
    try:
        info = pltpu.get_tpu_info()
        cap = getattr(info, "vmem_capacity_bytes", None)
        vmem_cap = int(cap) if cap else None
    except Exception:
        vmem_cap = None
    if vmem_cap is None:
        vmem_cap = (64 << 20) if ("v7" in kind or not kind) else (128 << 20)
    return kind, vmem_cap


def _footprint(tm, ti, hidden, x_itemsize, w_itemsize, io_bufs):
    """Approximate VMEM bytes for one pipelined grid step."""
    return (io_bufs * tm * hidden * x_itemsize          # x tile(s)
            + io_bufs * tm * hidden * x_itemsize        # out tile(s)
            + tm * hidden * 4                           # f32 accumulator scratch
            + 2 * (2 * ti) * hidden * w_itemsize        # fused gate|up tile, double-buffered
            + 2 * ti * hidden * w_itemsize)             # down tile, double-buffered


def _choose_ti(intermediate, hidden, w_itemsize, vmem_budget, ti_target=512):
    """Intermediate-axis tile (lane-aligned).  Shrink until the double-buffered weight
    tiles use at most ~55% of the VMEM budget (v7x H=8192 -> 256)."""
    cap = _round_up(intermediate, 128)
    ti = max(128, min(_round_up(min(ti_target, 512), 128), cap))
    while ti > 128 and 6 * ti * hidden * w_itemsize > 0.55 * vmem_budget:
        ti -= 128
    return ti


def _choose_tm(M, hidden, ti, x_itemsize, w_itemsize, kind, vmem_budget, tm_override=None):
    """Token-row tile + x/out buffering depth, generation-aware and VMEM-clamped."""
    pack = 16 if x_itemsize < 4 else 8          # sublane-pack alignment for the (tm, H) tiles
    if tm_override is not None:
        tm = max(pack, _round_up(tm_override, pack))
    else:
        if "v6" in kind:
            tm = 640        # v6e ridge ~650 flop/B: push the weight stream to compute-bound
        elif "v7" in kind:
            tm = 512        # v7x ridge ~311 flop/B; 64 MiB VMEM clamp below
        else:
            tm = 256        # v5e (and unknown): already compute-bound at 256
        tm = _round_up(tm, pack)
        # v7x megacore: keep both TensorCores busy when M would otherwise be a single tile.
        if "v7" in kind and M >= 256 and _round_up(M, tm) // tm < 2:
            tm = max(128, _round_up((M + 1) // 2, 128))
    tm = max(pack, min(tm, _round_up(M, pack)))
    # Clamp against the VMEM budget: shrink tm first, then drop x/out to single-buffering.
    while tm > 256 and _footprint(tm, ti, hidden, x_itemsize, w_itemsize, 2) > vmem_budget:
        tm -= 128
    io_bufs = 2
    if _footprint(tm, ti, hidden, x_itemsize, w_itemsize, 2) > vmem_budget:
        io_bufs = 1
    return tm, io_bufs


def _io_spec(block_shape, index_map, io_bufs):
    """x/out BlockSpec; optionally single-buffered to free VMEM (their block index only
    changes on the outer M axis, so double-buffering buys little)."""
    if io_bufs == 1:
        try:
            return pl.BlockSpec(block_shape, index_map, pipeline_mode=pl.Buffered(1))
        except TypeError:           # older JAX without pipeline_mode: fall back
            pass
    return pl.BlockSpec(block_shape, index_map)


def _make_gated_mlp_kernel(ti, mxu_dtype, cast_x):
    def kernel(x_ref, wgu_ref, wd_ref, o_ref, acc_ref):
        # x_ref   : (tm, H)        token-row tile
        # wgu_ref : (H, 2*ti)      fused [gate_tile | up_tile], K-major, MXU dtype
        # wd_ref  : (ti, H)        down-proj tile, K-major, MXU dtype
        # o_ref   : (tm, H)        output tile (resident across the I axis)
        # acc_ref : (tm, H) f32    accumulator scratch
        j = pl.program_id(1)

        x = x_ref[...]
        if cast_x:
            x = x.astype(mxu_dtype)         # bf16 MXU operands; hidden under MXU issue

        # Fused gate+up projection: one MXU pass over the (H, 2*ti) tile.
        gu = jnp.dot(x, wgu_ref[...], preferred_element_type=jnp.float32)   # (tm, 2*ti)
        gate = gu[:, :ti]
        up = gu[:, ti:]

        # SwiGLU on the (tm, ti) tile in f32 (sigmoid -> EUP, muls -> VPU).
        h = (gate * jax.nn.sigmoid(gate)) * up

        # Partial down projection for this intermediate slice.
        partial = jnp.dot(h.astype(mxu_dtype), wd_ref[...],
                          preferred_element_type=jnp.float32)               # (tm, H)

        @pl.when(j == 0)
        def _():
            acc_ref[...] = partial          # overwrite: no zero-init store / first load

        @pl.when(j > 0)
        def _():
            acc_ref[...] += partial

        @pl.when(j == pl.num_programs(1) - 1)
        def _():
            o_ref[...] = acc_ref[...].astype(o_ref.dtype)

    return kernel


def prepare_yica_mlp_weights(gate_w, up_w, down_w, *, ti, mxu_dtype):
    """One-time weight prep (pay padding/transpose/fusion/cast cost at load, not per call).

    gate_w, up_w : (I, H)  torch Linear (out, in) layout
    down_w       : (H, I)
    Returns:
      w_gu : (H, 2*I_pad)  per-ti-tile interleaved [gate_j | up_j], K-major, mxu_dtype
      w_d  : (I_pad, H)    down_w transposed (K-major), mxu_dtype
    """
    I, H = gate_w.shape
    i_pad = _round_up(I, ti)
    g, u, d = gate_w, up_w, down_w
    if i_pad != I:
        # Zero-padding the intermediate axis is a mathematical no-op for SwiGLU.
        g = jnp.pad(g, ((0, i_pad - I), (0, 0)))
        u = jnp.pad(u, ((0, i_pad - I), (0, 0)))
        d = jnp.pad(d, ((0, 0), (0, i_pad - I)))
    gT = g.astype(mxu_dtype).T          # (H, I_pad)
    uT = u.astype(mxu_dtype).T          # (H, I_pad)
    w_d = d.astype(mxu_dtype).T         # (I_pad, H)
    n_j = i_pad // ti
    w_gu = jnp.concatenate(
        [gT.reshape(H, n_j, ti), uT.reshape(H, n_j, ti)], axis=-1
    ).reshape(H, 2 * i_pad)
    return w_gu, w_d


def _yica_gated_mlp(x, w_gu, w_d, *, ti, mxu_dtype, tm_override, kind, vmem_cap):
    """Fused forward on prepared weights.  x: (batch, seq, hidden)."""
    batch, seq, hidden = x.shape
    assert w_gu.shape[0] == hidden and w_d.shape[1] == hidden
    n_j = w_gu.shape[1] // (2 * ti)
    dtype = x.dtype
    x_it = jnp.dtype(dtype).itemsize
    w_it = jnp.dtype(mxu_dtype).itemsize

    M = batch * seq
    x2 = x.reshape(M, hidden)

    budget = int(0.7 * vmem_cap)        # leave headroom for Mosaic internal scratch
    tm, io_bufs = _choose_tm(M, hidden, ti, x_it, w_it, kind, budget, tm_override)
    m_pad = _round_up(M, tm)
    if m_pad != M:
        x2 = jnp.pad(x2, ((0, m_pad - M), (0, 0)))

    grid = (m_pad // tm, n_j)
    fp = _footprint(tm, ti, hidden, x_it, w_it, io_bufs)
    vmem_limit = int(min(vmem_cap, max(fp * 1.25 + (4 << 20), 32 << 20)))

    kernel = _make_gated_mlp_kernel(ti, jnp.dtype(mxu_dtype),
                                    cast_x=(jnp.dtype(dtype) != jnp.dtype(mxu_dtype)))

    out2 = pl.pallas_call(
        kernel,
        out_shape=jax.ShapeDtypeStruct((m_pad, hidden), dtype),
        grid_spec=pltpu.PrefetchScalarGridSpec(
            num_scalar_prefetch=0,
            grid=grid,
            in_specs=[
                _io_spec((tm, hidden), lambda i, j: (i, 0), io_bufs),      # x rows
                pl.BlockSpec((hidden, 2 * ti), lambda i, j: (0, j)),       # fused gate|up
                pl.BlockSpec((ti, hidden), lambda i, j: (j, 0)),           # down tile
            ],
            out_specs=_io_spec((tm, hidden), lambda i, j: (i, 0), io_bufs),
            scratch_shapes=[pltpu.VMEM((tm, hidden), jnp.float32)],
        ),
        compiler_params=pltpu.CompilerParams(
            dimension_semantics=("parallel", "arbitrary"),
            vmem_limit_bytes=vmem_limit,
        ),
    )(x2, w_gu, w_d)

    return out2[:M].reshape(batch, seq, hidden)


def make_yica_mlp(gate_w, up_w, down_w, *, mxu_dtype=None, tm=None, ti=None):
    """Build the fused YICA gated-MLP forward.

    gate_w, up_w : (intermediate, hidden)   torch.nn.Linear weight layout (out, in)
    down_w       : (hidden, intermediate)
    mxu_dtype    : dtype fed to the MXU (default: bf16 if weights are f32, else as-is)
    Returns forward(x) with x: (batch, seq, hidden) -> (batch, seq, hidden).
    """
    kind, vmem_cap = _tpu_info()
    budget = int(0.7 * vmem_cap)
    I, H = gate_w.shape
    if mxu_dtype is None:
        mxu_dtype = (jnp.bfloat16 if jnp.dtype(gate_w.dtype) == jnp.dtype(jnp.float32)
                     else gate_w.dtype)
    mxu_dtype = jnp.dtype(mxu_dtype)
    if ti is None:
        ti = _choose_ti(I, H, mxu_dtype.itemsize, budget)
    w_gu, w_d = prepare_yica_mlp_weights(gate_w, up_w, down_w, ti=ti, mxu_dtype=mxu_dtype)

    fwd = jax.jit(functools.partial(
        _yica_gated_mlp, ti=ti, mxu_dtype=mxu_dtype, tm_override=tm,
        kind=kind, vmem_cap=vmem_cap))

    def forward(x):
        return fwd(x, w_gu, w_d)

    return forward


def _reference_gated_mlp(x, gate_w, up_w, down_w):
    """Pure-JAX f32 reference matching the PyTorch fallback path."""
    xf = x.astype(jnp.float32)
    g = jnp.einsum("bsh,ih->bsi", xf, gate_w.astype(jnp.float32))
    u = jnp.einsum("bsh,ih->bsi", xf, up_w.astype(jnp.float32))
    h = jax.nn.silu(g) * u
    return jnp.einsum("bsi,hi->bsh", h, down_w.astype(jnp.float32))


if __name__ == "__main__":
    key = jax.random.PRNGKey(0)

    # --- test 1: exact f32 MXU path, single tile (batch=2, seq=8, hidden=32, I=64) ---
    b, s, h, i = 2, 8, 32, 64
    k_x, k_g, k_u, k_d, key = jax.random.split(key, 5)
    x = jax.random.normal(k_x, (b, s, h), jnp.float32)
    gw = jax.random.normal(k_g, (i, h), jnp.float32) * 0.05
    uw = jax.random.normal(k_u, (i, h), jnp.float32) * 0.05
    dw = jax.random.normal(k_d, (h, i), jnp.float32) * 0.05
    fwd = make_yica_mlp(gw, uw, dw, mxu_dtype=jnp.float32)
    out = jax.block_until_ready(fwd(x))
    ref = _reference_gated_mlp(x, gw, uw, dw)
    assert out.shape == (b, s, h)
    assert jnp.allclose(out, ref, atol=2e-3, rtol=2e-3), "mismatch vs reference (test 1)"

    # --- test 2: default bf16 MXU path from f32 activations; multiple M tiles,
    #             ragged M padding, and I-axis accumulation (n_j = 2) ---
    b, s, h, i = 2, 23, 64, 256
    k_x, k_g, k_u, k_d, key = jax.random.split(key, 5)
    x = jax.random.normal(k_x, (b, s, h), jnp.float32)
    gw = jax.random.normal(k_g, (i, h), jnp.float32) * 0.05
    uw = jax.random.normal(k_u, (i, h), jnp.float32) * 0.05
    dw = jax.random.normal(k_d, (h, i), jnp.float32) * 0.05
    fwd = make_yica_mlp(gw, uw, dw, tm=16, ti=128)   # force multi-tile grid (3, 2)
    out = jax.block_until_ready(fwd(x))
    ref = _reference_gated_mlp(x, gw, uw, dw)
    assert out.shape == (b, s, h)
    assert out.dtype == x.dtype
    assert jnp.allclose(out, ref, atol=3e-2, rtol=3e-2), "mismatch vs reference (test 2)"

    # --- test 3: production dtype (bf16 activations + bf16 weights) ---
    x_bf = x.astype(jnp.bfloat16)
    fwd = make_yica_mlp(gw.astype(jnp.bfloat16), uw.astype(jnp.bfloat16),
                        dw.astype(jnp.bfloat16), tm=16, ti=128)
    out = jax.block_until_ready(fwd(x_bf))
    assert out.shape == (b, s, h)
    assert out.dtype == jnp.bfloat16
    assert jnp.allclose(out.astype(jnp.float32), ref, atol=6e-2, rtol=6e-2), \
        "mismatch vs reference (test 3)"

    print("KERNEL_OK")
</pallas_src>

<mosaic_0001>
module attributes {stable_mosaic.version = 11 : i64} {
  func.func @kernel(%arg0: i32, %arg1: i32, %arg2: memref<16x32xf32, #tpu.memory_space<vmem>>, %arg3: memref<32x256xf32, #tpu.memory_space<vmem>>, %arg4: memref<128x32xf32, #tpu.memory_space<vmem>>, %arg5: memref<16x32xf32, #tpu.memory_space<vmem>>, %arg6: memref<16x32xf32, #tpu.memory_space<vmem>>) attributes {dimension_semantics = [#tpu.dimension_semantics<parallel>, #tpu.dimension_semantics<arbitrary>], iteration_bounds = array<i64: 1, 1>, scalar_prefetch = 0 : i64, scratch_operands = 1 : i64, tpu.core_type = #tpu.core_type<tc>, window_params = [{transform_indices = @transform_0, window_bounds = array<i64: 16, 32>}, {transform_indices = @transform_1, window_bounds = array<i64: 32, 256>}, {transform_indices = @transform_2, window_bounds = array<i64: 128, 32>}, {transform_indices = @transform_3, window_bounds = array<i64: 16, 32>}]} {
    %c0 = arith.constant 0 : index
    %c0_0 = arith.constant 0 : index
    %0 = vector.load %arg2[%c0, %c0_0] : memref<16x32xf32, #tpu.memory_space<vmem>>, vector<16x32xf32>
    %c0_1 = arith.constant 0 : index
    %c0_2 = arith.constant 0 : index
    %1 = vector.load %arg3[%c0_1, %c0_2] : memref<32x256xf32, #tpu.memory_space<vmem>>, vector<32x256xf32>
    %cst = arith.constant dense<0.000000e+00> : vector<16x256xf32>
    %2 = tpu.matmul %0, %1, %cst {dimension_numbers = #tpu.dot_dimension_numbers<[1], [0], [0], [1], [0, 0, 1, 1], [], []>} : vector<16x32xf32>, vector<32x256xf32>, vector<16x256xf32> -> vector<16x256xf32>
    %3 = vector.extract_strided_slice %2 {offsets = [0, 0], sizes = [16, 128], strides = [1, 1]} : vector<16x256xf32> to vector<16x128xf32>
    %4 = vector.extract_strided_slice %2 {offsets = [0, 128], sizes = [16, 128], strides = [1, 1]} : vector<16x256xf32> to vector<16x128xf32>
    %5 = arith.negf %3 : vector<16x128xf32>
    %6 = math.exp %5 : vector<16x128xf32>
    %cst_3 = arith.constant 1.000000e+00 : f32
    %7 = vector.broadcast %cst_3 : f32 to vector<16x128xf32>
    %8 = arith.addf %7, %6 : vector<16x128xf32>
    %9 = arith.divf %7, %8 : vector<16x128xf32>
    %10 = arith.mulf %3, %9 : vector<16x128xf32>
    %11 = arith.mulf %10, %4 : vector<16x128xf32>
    %c0_4 = arith.constant 0 : index
    %c0_5 = arith.constant 0 : index
    %12 = vector.load %arg4[%c0_4, %c0_5] : memref<128x32xf32, #tpu.memory_space<vmem>>, vector<128x32xf32>
    %cst_6 = arith.constant dense<0.000000e+00> : vector<16x32xf32>
    %13 = tpu.matmul %11, %12, %cst_6 {dimension_numbers = #tpu.dot_dimension_numbers<[1], [0], [0], [1], [0, 0, 1, 1], [], []>} : vector<16x128xf32>, vector<128x32xf32>, vector<16x32xf32> -> vector<16x32xf32>
    %c0_i32 = arith.constant 0 : i32
    %14 = arith.cmpi eq, %arg1, %c0_i32 : i32
    %15 = arith.extui %14 : i1 to i32
    %c0_i32_7 = arith.constant 0 : i32
    %16 = arith.cmpi ne, %15, %c0_i32_7 : i32
    scf.if %16 {
      %c0_12 = arith.constant 0 : index
      %c0_13 = arith.constant 0 : index
      %23 = vector.load %arg6[%c0_12, %c0_13] : memref<16x32xf32, #tpu.memory_space<vmem>>, vector<16x32xf32>
      tpu.vector_store %arg6[%c0_12, %c0_13], %13 {strides = array<i32>} : memref<16x32xf32, #tpu.memory_space<vmem>>, vector<16x32xf32>,
    } else {
    }
    %c0_i32_8 = arith.constant 0 : i32
    %17 = arith.cmpi sgt, %arg1, %c0_i32_8 : i32
    %18 = arith.extui %17 : i1 to i32
    %c0_i32_9 = arith.constant 0 : i32
    %19 = arith.cmpi ne, %18, %c0_i32_9 : i32
    scf.if %19 {
      %c0_12 = arith.constant 0 : index
      %c0_13 = arith.constant 0 : index
      %23 = vector.load %arg6[%c0_12, %c0_13] : memref<16x32xf32, #tpu.memory_space<vmem>>, vector<16x32xf32>
      %24 = arith.addf %23, %13 : vector<16x32xf32>
      %c0_14 = arith.constant 0 : index
      %c0_15 = arith.constant 0 : index
      %25 = vector.load %arg6[%c0_14, %c0_15] : memref<16x32xf32, #tpu.memory_space<vmem>>, vector<16x32xf32>
      tpu.vector_store %arg6[%c0_14, %c0_15], %24 {strides = array<i32>} : memref<16x32xf32, #tpu.memory_space<vmem>>, vector<16x32xf32>,
    } else {
    }
    %c0_i32_10 = arith.constant 0 : i32
    %20 = arith.cmpi eq, %arg1, %c0_i32_10 : i32
    %21 = arith.extui %20 : i1 to i32
    %c0_i32_11 = arith.constant 0 : i32
    %22 = arith.cmpi ne, %21, %c0_i32_11 : i32
    scf.if %22 {
      %c0_12 = arith.constant 0 : index
      %c0_13 = arith.constant 0 : index
      %23 = vector.load %arg6[%c0_12, %c0_13] : memref<16x32xf32, #tpu.memory_space<vmem>>, vector<16x32xf32>
      %c0_14 = arith.constant 0 : index
      %c0_15 = arith.constant 0 : index
      %24 = vector.load %arg5[%c0_14, %c0_15] : memref<16x32xf32, #tpu.memory_space<vmem>>, vector<16x32xf32>
      tpu.vector_store %arg5[%c0_14, %c0_15], %23 {strides = array<i32>} : memref<16x32xf32, #tpu.memory_space<vmem>>, vector<16x32xf32>,
    } else {
    }
    return
  }
  func.func @transform_0(%arg0: i32, %arg1: i32) -> (i32, i32) {
    %c0_i32 = arith.constant 0 : i32
    %c0_i32_0 = arith.constant 0 : i32
    return %arg0, %c0_i32 : i32, i32
  }
  func.func @transform_1(%arg0: i32, %arg1: i32) -> (i32, i32) {
    %c0_i32 = arith.constant 0 : i32
    %c0_i32_0 = arith.constant 0 : i32
    return %c0_i32, %arg1 : i32, i32
  }
  func.func @transform_2(%arg0: i32, %arg1: i32) -> (i32, i32) {
    %c0_i32 = arith.constant 0 : i32
    %c0_i32_0 = arith.constant 0 : i32
    return %arg1, %c0_i32 : i32, i32
  }
  func.func @transform_3(%arg0: i32, %arg1: i32) -> (i32, i32) {
    %c0_i32 = arith.constant 0 : i32
    %c0_i32_0 = arith.constant 0 : i32
    return %arg0, %c0_i32 : i32, i32
  }
}

</mosaic_0001>

<llo_original>
// kernel: _yica_gated_mlp.1
$region0: #{_yica_gated_mlp.1}
  #allocation0 [shape = 'u32[]', space=smem, size = 0x4, offset = 0x4, fixed_abs, tag = 'smem constant byte address 0x4 - core index']
  #allocation1 [shape = 'u32[72,128]{1,0:T(1,128)}', space=vmem, size = 0x9000, scoped, tag = 'internal scratch']
  #allocation2 [shape = 'f32[16,32]{1,0:T(8,128)}', space=vmem, size = 0x2000, scoped, tag = 'scratch operand']
  %s0 = inlined_call_operand.vmem [shape: f32[16,32], index: 0, kind: input, shape index: {}]
  %s1 = inlined_call_operand.vmem [shape: f32[32,256], index: 1, kind: input, shape index: {}]
  %s2 = inlined_call_operand.vmem [shape: f32[128,32], index: 2, kind: input, shape index: {}]
  %s3 = inlined_call_operand.hbm [shape: f32[16,32], index: 3, kind: output, shape index: {}]
  %s4 = sld [smem:[#allocation0]]
  $region34: #{_yica_gated_mlp.1} parent=0
    _
  %s6 = ssub.s32 1, %s4
  %s7 = scalar_select 0, %s6, %s4
  $region1: #{_yica_gated_mlp.1} parent=0
    #allocation3 [shape = 'u8[8192]{0}', space=vmem, size = 0x2000, scoped, tag = 'output window, operand 0, single buffered']
    #allocation4 [shape = 's32[1]{0}', space=sflag, size = 0x4, scoped, tag = 'scoped memory for _yica_gated_mlp.1']
    %8 = vsyncpa [#allocation4], 0
    // Predicated region
    $region2: #{_yica_gated_mlp.1} parent=1 // pred_check
      _
    $region3: #{_yica_gated_mlp.1} parent=1 // pred_check_branch
      %10 = sbr.rel (0) target = $region5
    $region4: #{_yica_gated_mlp.1} parent=1 // pred_region
      _
    $region5: #{_yica_gated_mlp.1} parent=1 // pred_fallthru
      _
    // Predicated region
    $region6: #{_yica_gated_mlp.1} parent=1 // pred_check
      _
    $region7: #{_yica_gated_mlp.1} parent=1 // pred_check_branch
      %12 = sbr.rel (0) target = $region9
    $region8: #{_yica_gated_mlp.1} parent=1 // pred_region
      _
    $region9: #{_yica_gated_mlp.1} parent=1 // pred_fallthru
      _
    // Predicated region
    $region10: #{_yica_gated_mlp.1} parent=1 // pred_check
      _
    $region11: #{_yica_gated_mlp.1} parent=1 // pred_check_branch
      %14 = sbr.rel (0) target = $region13
    $region12: #{_yica_gated_mlp.1} parent=1 // pred_region
      _
    $region13: #{_yica_gated_mlp.1} parent=1 // pred_fallthru
      _
    %v15 = vld [vmem:[%s0] sm:$0xff]
    %v16 = vld [vmem:[%s0 + $0x8] sm:$0xff]
    %v17 = vld [vmem:[%s1] sm:$0xff]
    %v18 = vld [vmem:[%s1 + $0x8] sm:$0xff]
    %v19 = vld [vmem:[%s1 + $0x10] sm:$0xff]
    %v20 = vld [vmem:[%s1 + $0x18] sm:$0xff]
    %v21 = vld [vmem:[%s1 + $0x20] sm:$0xff]
    %v22 = vld [vmem:[%s1 + $0x28] sm:$0xff]
    %v23 = vld [vmem:[%s1 + $0x30] sm:$0xff]
    %v24 = vld [vmem:[%s1 + $0x38] sm:$0xff]
    %vm25 = vcmask 261120
    %v27 = vsel %vm25, %v15, 0
    %v30 = vsel %vm25, %v16, 0
    %32 = vmatpush.msra.mxu0 0.0
    %33 = vmatpush.msra.mxu0 0.0
    %34 = vmatpush.msra.mxu0 0.0
    %35 = vmatpush.msra.mxu0 0.0
    %36 = vmatpush.msra.mxu0 0.0
    %37 = vmatpush.msra.mxu0 0.0
    %38 = vmatpush.msra.mxu0 0.0
    %39 = vmatpush.msra.mxu0 0.0
    %40 = vmatpush.msra.mxu0 0.0
    %41 = vmatpush.msra.mxu0 0.0
    %42 = vmatpush.msra.mxu0 0.0
    %43 = vmatpush.msra.mxu0 0.0
    %44 = vmatpush.msra.mxu0 %v23
    %45 = vmatpush.msra.mxu0 %v21
    %46 = vmatpush.msra.mxu0 %v19
    %47 = vmatpush.msra.mxu0 %v17
    %48 = vmatmul.f32.gmra.mxu0 %v27
    %v49 = vpop.f32.mrf.mxu0
    %v50 = vadd.f32 0.0, %v49
    %51 = vmatmul.f32.gmra.mxu0 %v30
    %v52 = vpop.f32.mrf.mxu0
    %v53 = vadd.f32 0.0, %v52
    %54 = vdwg.mxu0
    %55 = vmatpush.msra.mxu0 0.0
    %56 = vmatpush.msra.mxu0 0.0
    %57 = vmatpush.msra.mxu0 0.0
    %58 = vmatpush.msra.mxu0 0.0
    %59 = vmatpush.msra.mxu0 0.0
    %60 = vmatpush.msra.mxu0 0.0
    %61 = vmatpush.msra.mxu0 0.0
    %62 = vmatpush.msra.mxu0 0.0
    %63 = vmatpush.msra.mxu0 0.0
    %64 = vmatpush.msra.mxu0 0.0
    %65 = vmatpush.msra.mxu0 0.0
    %66 = vmatpush.msra.mxu0 0.0
    %67 = vmatpush.msra.mxu0 %v24
    %68 = vmatpush.msra.mxu0 %v22
    %69 = vmatpush.msra.mxu0 %v20
    %70 = vmatpush.msra.mxu0 %v18
    %71 = vmatmul.f32.gmra.mxu0 %v27
    %v72 = vpop.f32.mrf.mxu0
    %v73 = vadd.f32 0.0, %v72
    %74 = vmatmul.f32.gmra.mxu0 %v30
    %v75 = vpop.f32.mrf.mxu0
    %v76 = vadd.f32 0.0, %v75
    %77 = vdwg.mxu0
    %v78 = vxor.u32 %v50, 2147483648
    %v79 = vxor.u32 %v53, 2147483648
    %v80 = vmul.f32 %v78, 1.442695
    %v81 = vpow.pop %v80
    %v82 = vmul.f32 %v79, 1.442695
    %v83 = vpow.pop %v82
    %v84 = vadd.f32 %v81, 1.0
    %v85 = vadd.f32 %v83, 1.0
    %v86 = vrcp.pop %v84
    %v87 = vmul.f32 %v84, %v86
    %v88 = vsub.f32 1.0, %v87
    %v89 = vmul.f32 %v86, %v88
    %v90 = vadd.f32 %v86, %v89
    %vm91 = vweird.f32 %v84
    %vm92 = vweird.f32 %v86
    %vm93 = vmor %vm91, %vm92
    %v94 = vsel %vm93, %v86, %v90
    %v95 = vand.u32 2147483647, %v84
    %vm96 = vcmp.eq.f32.partialorder %v95, 8.507059e+37
    %v97 = vand.u32 %v84, 2147483648
    %v98 = vor.u32 1.1754944e-38, %v97
    %v99 = vsel %vm96, %v98, %v94
    %v100 = vmul.f32 1.0, %v99
    %v101 = vrcp.pop %v85
    %v102 = vmul.f32 %v85, %v101
    %v103 = vsub.f32 1.0, %v102
    %v104 = vmul.f32 %v101, %v103
    %v105 = vadd.f32 %v101, %v104
    %vm106 = vweird.f32 %v85
    %vm107 = vweird.f32 %v101
    %vm108 = vmor %vm106, %vm107
    %v109 = vsel %vm108, %v101, %v105
    %v110 = vand.u32 2147483647, %v85
    %vm111 = vcmp.eq.f32.partialorder %v110, 8.507059e+37
    %v112 = vand.u32 %v85, 2147483648
    %v113 = vor.u32 1.1754944e-38, %v112
    %v114 = vsel %vm111, %v113, %v109
    %v115 = vmul.f32 1.0, %v114
    %v116 = vmul.f32 %v50, %v100
    %v117 = vmul.f32 %v53, %v115
    %v118 = vmul.f32 %v116, %v73
    %v119 = vmul.f32 %v117, %v76
    %v120 = vld [vmem:[%s2] sm:$0xff]
    %v121 = vld [vmem:[%s2 + $0x8] sm:$0xff]
    %v122 = vld [vmem:[%s2 + $0x10] sm:$0xff]
    %v123 = vld [vmem:[%s2 + $0x18] sm:$0xff]
    %v124 = vld [vmem:[%s2 + $0x20] sm:$0xff]
    %v125 = vld [vmem:[%s2 + $0x28] sm:$0xff]
    %v126 = vld [vmem:[%s2 + $0x30] sm:$0xff]
    %v127 = vld [vmem:[%s2 + $0x38] sm:$0xff]
    %v128 = vld [vmem:[%s2 + $0x40] sm:$0xff]
    %v129 = vld [vmem:[%s2 + $0x48] sm:$0xff]
    %v130 = vld [vmem:[%s2 + $0x50] sm:$0xff]
    %v131 = vld [vmem:[%s2 + $0x58] sm:$0xff]
    %v132 = vld [vmem:[%s2 + $0x60] sm:$0xff]
    %v133 = vld [vmem:[%s2 + $0x68] sm:$0xff]
    %v134 = vld [vmem:[%s2 + $0x70] sm:$0xff]
    %v135 = vld [vmem:[%s2 + $0x78] sm:$0xff]
    %136 = vmatpush.msra.mxu0 %v135
    %137 = vmatpush.msra.mxu0 %v134
    %138 = vmatpush.msra.mxu0 %v133
    %139 = vmatpush.msra.mxu0 %v132
    %140 = vmatpush.msra.mxu0 %v131
    %141 = vmatpush.msra.mxu0 %v130
    %142 = vmatpush.msra.mxu0 %v129
    %143 = vmatpush.msra.mxu0 %v128
    %144 = vmatpush.msra.mxu0 %v127
    %145 = vmatpush.msra.mxu0 %v126
    %146 = vmatpush.msra.mxu0 %v125
    %147 = vmatpush.msra.mxu0 %v124
    %148 = vmatpush.msra.mxu0 %v123
    %149 = vmatpush.msra.mxu0 %v122
    %150 = vmatpush.msra.mxu0 %v121
    %151 = vmatpush.msra.mxu0 %v120
    %152 = vmatmul.f32.gmra.mxu0 %v118
    %v153 = vpop.f32.mrf.mxu0
    %v154 = vadd.f32 0.0, %v153
    %155 = vmatmul.f32.gmra.mxu0 %v119
    %v156 = vpop.f32.mrf.mxu0
    %v157 = vadd.f32 0.0, %v156
    %158 = vdwg.mxu0
    %p159 = scmp.eq.s32.totalorder 0, 0
    // Predicated region
    $region14: #{_yica_gated_mlp.1} parent=1 // pred_check
      %p160 = pneg %p159
    $region15: #{_yica_gated_mlp.1} parent=1 // pred_check_branch
      %162 = sbr.rel (%p160) target = $region17
    $region16: #{_yica_gated_mlp.1} parent=1 // pred_region
      %163 = vst.msk [vmem:[#allocation2] sm:$0xff] %vm25, %v154
      %164 = vst.msk [vmem:[#allocation2 + $0x8] sm:$0xff] %vm25, %v157
    $region17: #{_yica_gated_mlp.1} parent=1 // pred_fallthru
      _
    %p165 = scmp.gt.s32.totalorder 0, 0
    // Predicated region
    $region18: #{_yica_gated_mlp.1} parent=1 // pred_check
      %p166 = pneg %p165
    $region19: #{_yica_gated_mlp.1} parent=1 // pred_check_branch
      %168 = sbr.rel (%p166) target = $region21
    $region20: #{_yica_gated_mlp.1} parent=1 // pred_region
      %v169 = vld [vmem:[#allocation2] sm:$0xff]
      %v170 = vld [vmem:[#allocation2 + $0x8] sm:$0xff]
      %v171 = vadd.f32 %v169, %v154
      %v172 = vadd.f32 %v170, %v157
      %173 = vst.msk [vmem:[#allocation2] sm:$0xff] %vm25, %v171
      %174 = vst.msk [vmem:[#allocation2 + $0x8] sm:$0xff] %vm25, %v172
    $region21: #{_yica_gated_mlp.1} parent=1 // pred_fallthru
      _
    // Predicated region
    $region22: #{_yica_gated_mlp.1} parent=1 // pred_check
      %p175 = pneg %p159
    $region23: #{_yica_gated_mlp.1} parent=1 // pred_check_branch
      %177 = sbr.rel (%p175) target = $region25
    $region24: #{_yica_gated_mlp.1} parent=1 // pred_region
      %v178 = vld [vmem:[#allocation2] sm:$0xff]
      %v179 = vld [vmem:[#allocation2 + $0x8] sm:$0xff]
      %180 = vst.msk [vmem:[#allocation3] sm:$0xff] %vm25, %v178
      %181 = vst.msk [vmem:[#allocation3 + $0x8] sm:$0xff] %vm25, %v179
    $region25: #{_yica_gated_mlp.1} parent=1 // pred_fallthru
      _
    // Predicated region
    $region26: #{_yica_gated_mlp.1} parent=1 // pred_check
      _
    $region27: #{_yica_gated_mlp.1} parent=1 // pred_check_branch
      %183 = sbr.rel (0) target = $region29
    $region28: #{_yica_gated_mlp.1} parent=1 // pred_region
      %185 = vsyncadd [#allocation4], 0
      %s186 = sshll.u32 [#allocation3], 4
      %s187 = int_to_ptr.vmem [resolvable:$true] %s186
      %s188 = sshll.u32 %s3, 4
      %s189 = int_to_ptr.hbm [resolvable:$true] %s188
      %194 = dma.vmem_to_hbm [thread:$0]  %s187, 256, %s189, [#allocation4], 128, 128, 8
    $region29: #{_yica_gated_mlp.1} parent=1 // pred_fallthru
      _
    // Predicated region
    $region30: #{_yica_gated_mlp.1} parent=1 // pred_check
      _
    $region31: #{_yica_gated_mlp.1} parent=1 // pred_check_branch
      %196 = sbr.rel (0) target = $region33
    $region32: #{_yica_gated_mlp.1} parent=1 // pred_region
      %198 = dma.done [#allocation4], 256
    $region33: #{_yica_gated_mlp.1} parent=1 // pred_fallthru
      _
    %199 = vsyncpa [#allocation4], 1

</llo_original>
